<compile_context>
chip_gen: v5e
topology: v5e:2x2
jax: 0.10.0
libtpu: 0.0.40
codegen_flags: <defaults>
</compile_context>

<pallas_src>
import functools
import math

import jax
import jax.numpy as jnp
from jax.experimental import pallas as pl
from jax.experimental.pallas import tpu as pltpu

_LANES = 128
_SUBLANES = 8
_NEG_LARGE = -1e30  # finite stand-in for -inf when masking padded class columns


def _round_up(x, m):
    return (x + m - 1) // m * m


# ----------------------------------------------------------------------------
# Generation-aware tiling plan
# ----------------------------------------------------------------------------
def _vmem_budget():
    """VMEM sizing that adapts to the generation (v5e/v6e: 128 MiB, v7x: 64 MiB/core)."""
    cap = 64 << 20  # conservative default (v7x per-core VMEM) if query unavailable
    try:
        cap = int(getattr(pltpu.get_tpu_info(), "vmem_capacity_bytes", cap))
    except Exception:
        pass
    limit = min(cap // 2, 96 << 20)   # scoped VMEM limit we request from Mosaic
    budget = (limit * 3) // 4         # planning headroom for compiler temps / spills
    return limit, budget


def _plan(n, d_pad, kp):
    """Pick (tm, tk, w_resident, vmem_limit) for an (n, d_pad) @ (d_pad, kp) student."""
    vmem_limit, budget = _vmem_budget()

    def pick_tm(per_row_bytes, fixed_bytes, preferred=256):
        tm = min(preferred, _round_up(n, _SUBLANES))
        while tm > _SUBLANES and fixed_bytes + tm * per_row_bytes > budget:
            tm -= _SUBLANES
        # v7x megacore: ensure the "parallel" batch axis has >= 2 tiles when possible.
        if tm >= n and n > _SUBLANES:
            tm = _round_up(-(-n // 2), _SUBLANES)
        return max(tm, _SUBLANES)

    # W-resident path budget: W double-buffer (conservative) + bias, plus per-row cost of
    # the f32 x tile (double-buffered), its in-kernel bf16 copy, logits/CE temps.
    res_fixed = 4 * d_pad * kp + 8 * kp
    res_per_row = 10 * d_pad + 32 * kp
    if res_fixed + _SUBLANES * res_per_row <= budget:
        return pick_tm(res_per_row, res_fixed), d_pad, True, vmem_limit

    # Fallback: K-tiled reduction with an f32 accumulator (W re-streamed per batch tile,
    # mitigated by the large tm above).
    tk = min(2048, d_pad)
    while d_pad % tk:
        tk -= _LANES
    t_fixed = 4 * tk * kp + 8 * kp
    t_per_row = 10 * tk + 40 * kp
    return pick_tm(t_per_row, t_fixed), tk, False, vmem_limit


def _cost(n, d, kp, ce):
    return pl.CostEstimate(
        flops=2 * n * d * kp,
        transcendentals=(n * kp) if ce else 0,
        bytes_accessed=4 * n * d + 2 * d * kp + 4 * n * kp + 4 * kp)


# ----------------------------------------------------------------------------
# Pallas kernels
# ----------------------------------------------------------------------------
def _ce_epilogue(logits, tgt, loss_ref, num_classes):
    """Per-row cross entropy over the valid class columns; all math in f32."""
    tm, kp = logits.shape
    col = jax.lax.broadcasted_iota(jnp.int32, (tm, kp), 1)
    # Padded class columns must not contribute to the logsumexp.
    masked = jnp.where(col < num_classes, logits, _NEG_LARGE)
    m = jnp.max(masked, axis=1, keepdims=True)
    lse = m + jnp.log(jnp.sum(jnp.exp(masked - m), axis=1, keepdims=True))
    picked = jnp.sum(jnp.where(col == tgt, logits, 0.0), axis=1, keepdims=True)
    loss_ref[...] = lse - picked


def _linear_kernel(x_ref, w_ref, b_ref, logits_ref):
    """W-resident path: one full-K MXU dot; x is cast to bf16 in-kernel."""
    logits_ref[...] = (
        jnp.dot(x_ref[...].astype(jnp.bfloat16), w_ref[...],
                preferred_element_type=jnp.float32)
        + b_ref[...]).astype(logits_ref.dtype)


def _linear_kernel_tiled(x_ref, w_ref, b_ref, logits_ref, acc_ref):
    """K-tiled path: f32 accumulator, init at k==0, bias-add + store at k==last."""
    k = pl.program_id(1)  # all program_id reads stay at kernel top level

    @pl.when(k == 0)
    def _init():
        acc_ref[...] = jnp.zeros_like(acc_ref)

    acc_ref[...] += jnp.dot(x_ref[...].astype(jnp.bfloat16), w_ref[...],
                            preferred_element_type=jnp.float32)

    @pl.when(k == pl.num_programs(1) - 1)
    def _store():
        logits_ref[...] = (acc_ref[...] + b_ref[...]).astype(logits_ref.dtype)


def _linear_ce_kernel(x_ref, tgt_ref, w_ref, b_ref, logits_ref, loss_ref, *, num_classes):
    """Fused W-resident: logits = x @ W + b and per-row CE; logits stay in VMEM."""
    logits = (jnp.dot(x_ref[...].astype(jnp.bfloat16), w_ref[...],
                      preferred_element_type=jnp.float32) + b_ref[...])
    logits_ref[...] = logits.astype(logits_ref.dtype)
    _ce_epilogue(logits, tgt_ref[...], loss_ref, num_classes)


def _linear_ce_kernel_tiled(x_ref, tgt_ref, w_ref, b_ref, logits_ref, loss_ref, acc_ref,
                            *, num_classes):
    """Fused K-tiled: accumulate x @ W, CE epilogue at the last K step."""
    k = pl.program_id(1)  # NOTE: never call pl.program_id inside a pl.when body

    @pl.when(k == 0)
    def _init():
        acc_ref[...] = jnp.zeros_like(acc_ref)

    acc_ref[...] += jnp.dot(x_ref[...].astype(jnp.bfloat16), w_ref[...],
                            preferred_element_type=jnp.float32)

    @pl.when(k == pl.num_programs(1) - 1)
    def _finalize():
        logits = acc_ref[...] + b_ref[...]
        logits_ref[...] = logits.astype(logits_ref.dtype)
        _ce_epilogue(logits, tgt_ref[...], loss_ref, num_classes)


# ----------------------------------------------------------------------------
# pallas_call wrappers
# ----------------------------------------------------------------------------
def _prep_x(data, d_pad):
    n = data.shape[0]
    d = math.prod(data.shape[1:])
    x = data.reshape(n, d)          # no dtype cast, no batch pad: kernel reads f32 once
    if d_pad != d:                  # rare: only when the feature dim is not lane-aligned
        x = jnp.pad(x, ((0, 0), (0, d_pad - d)))
    return x, n


@functools.partial(jax.jit, static_argnames=("num_classes",))
def student_forward(data, w_pad, b_pad, *, num_classes):
    """Student only: (N, C, H, W) -> logits (N, num_classes)."""
    d_pad, kp = w_pad.shape
    x, n = _prep_x(data, d_pad)
    tm, tk, resident, vmem_limit = _plan(n, d_pad, kp)

    if resident:
        grid = (pl.cdiv(n, tm),)
        kernel = _linear_kernel
        in_specs = [
            pl.BlockSpec((tm, d_pad), lambda i: (i, 0)),
            pl.BlockSpec((d_pad, kp), lambda i: (0, 0)),   # VMEM-resident W
            pl.BlockSpec((1, kp), lambda i: (0, 0)),
        ]
        out_specs = pl.BlockSpec((tm, kp), lambda i: (i, 0))
        scratch = []
        sem = ("parallel",)
    else:
        grid = (pl.cdiv(n, tm), d_pad // tk)
        kernel = _linear_kernel_tiled
        in_specs = [
            pl.BlockSpec((tm, tk), lambda i, k: (i, k)),
            pl.BlockSpec((tk, kp), lambda i, k: (k, 0)),
            pl.BlockSpec((1, kp), lambda i, k: (0, 0)),
        ]
        out_specs = pl.BlockSpec((tm, kp), lambda i, k: (i, 0))
        scratch = [pltpu.VMEM((tm, kp), jnp.float32)]
        sem = ("parallel", "arbitrary")

    logits_pad = pl.pallas_call(
        kernel,
        out_shape=jax.ShapeDtypeStruct((n, kp), jnp.float32),
        grid=grid,
        in_specs=in_specs,
        out_specs=out_specs,
        scratch_shapes=scratch,
        compiler_params=pltpu.CompilerParams(
            dimension_semantics=sem, vmem_limit_bytes=vmem_limit),
        cost_estimate=_cost(n, d_pad, kp, ce=False),
    )(x, w_pad, b_pad)

    # TODO(synk): a downstream consumer could take the padded f32 slab (or bf16 logits)
    # directly to avoid this small slice copy.
    return logits_pad[:, :num_classes]


@functools.partial(jax.jit, static_argnames=("num_classes",))
def student_forward_with_ce(data, target, w_pad, b_pad, *, num_classes):
    """Fused student forward + mean cross-entropy (one HBM pass over the logits)."""
    d_pad, kp = w_pad.shape
    x, n = _prep_x(data, d_pad)
    tgt = target.astype(jnp.int32).reshape(n, 1)
    tm, tk, resident, vmem_limit = _plan(n, d_pad, kp)

    out_shape = (jax.ShapeDtypeStruct((n, kp), jnp.float32),
                 jax.ShapeDtypeStruct((n, 1), jnp.float32))

    if resident:
        grid = (pl.cdiv(n, tm),)
        kernel = functools.partial(_linear_ce_kernel, num_classes=num_classes)
        in_specs = [
            pl.BlockSpec((tm, d_pad), lambda i: (i, 0)),
            pl.BlockSpec((tm, 1), lambda i: (i, 0)),
            pl.BlockSpec((d_pad, kp), lambda i: (0, 0)),   # VMEM-resident W
            pl.BlockSpec((1, kp), lambda i: (0, 0)),
        ]
        out_specs = (pl.BlockSpec((tm, kp), lambda i: (i, 0)),
                     pl.BlockSpec((tm, 1), lambda i: (i, 0)))
        scratch = []
        sem = ("parallel",)
    else:
        grid = (pl.cdiv(n, tm), d_pad // tk)
        kernel = functools.partial(_linear_ce_kernel_tiled, num_classes=num_classes)
        in_specs = [
            pl.BlockSpec((tm, tk), lambda i, k: (i, k)),
            pl.BlockSpec((tm, 1), lambda i, k: (i, 0)),
            pl.BlockSpec((tk, kp), lambda i, k: (k, 0)),
            pl.BlockSpec((1, kp), lambda i, k: (0, 0)),
        ]
        out_specs = (pl.BlockSpec((tm, kp), lambda i, k: (i, 0)),
                     pl.BlockSpec((tm, 1), lambda i, k: (i, 0)))
        scratch = [pltpu.VMEM((tm, kp), jnp.float32)]
        sem = ("parallel", "arbitrary")

    logits_pad, row_loss = pl.pallas_call(
        kernel,
        out_shape=out_shape,
        grid=grid,
        in_specs=in_specs,
        out_specs=out_specs,
        scratch_shapes=scratch,
        compiler_params=pltpu.CompilerParams(
            dimension_semantics=sem, vmem_limit_bytes=vmem_limit),
        cost_estimate=_cost(n, d_pad, kp, ce=True),
    )(x, tgt, w_pad, b_pad)

    logits = logits_pad[:, :num_classes]
    loss = jnp.sum(row_loss) / jnp.float32(n)   # outputs hold exactly N valid rows
    return logits, loss


# ----------------------------------------------------------------------------
# Distiller (JAX version of the PyTorch module)
# ----------------------------------------------------------------------------
class Distiller:
    """Distiller with a built-in linear student; hot paths run in Pallas kernels."""

    def __init__(self, in_features, num_classes, key, teacher=None):
        kw, kb = jax.random.split(key)
        bound = 1.0 / math.sqrt(in_features)
        self.w = jax.random.uniform(
            kw, (in_features, num_classes), jnp.float32, -bound, bound)
        self.b = jax.random.uniform(
            kb, (1, num_classes), jnp.float32, -bound, bound)
        self.num_classes = num_classes
        # MXU-friendly parameter copies: classes zero-padded to 128 lanes, feature rows
        # zero-padded to a lane multiple, weights cast to bf16 for the MXU; bias stays
        # f32 for the epilogue add.
        kp = _round_up(num_classes, _LANES)
        d_pad = _round_up(in_features, _LANES)
        self._w_pad = jnp.pad(self.w.astype(jnp.bfloat16),
                              ((0, d_pad - in_features), (0, kp - num_classes)))
        self._b_pad = jnp.pad(self.b, ((0, 0), (0, kp - num_classes)))
        # TODO(synk): teacher forward / KD losses are subclass-specific in the original
        # repo (forward_train raises NotImplementedError there); only the generic student
        # path plus a vanilla CE loss is implemented here.
        self.teacher = teacher
        self.training = True

    def train(self, mode=True):
        if not isinstance(mode, bool):
            raise ValueError("training mode is expected to be boolean")
        self.training = mode
        return self

    def eval(self):
        return self.train(False)

    def get_learnable_parameters(self):
        return [self.w, self.b]

    def get_extra_parameters(self):
        return 0

    def forward_train(self, data, target, **kwargs):
        logits, ce = student_forward_with_ce(
            data, target, self._w_pad, self._b_pad, num_classes=self.num_classes)
        return logits, {"ce": ce}

    def forward_test(self, data):
        return student_forward(
            data, self._w_pad, self._b_pad, num_classes=self.num_classes)

    def forward(self, **kwargs):
        if self.training:
            return self.forward_train(**kwargs)
        return self.forward_test(kwargs["data"])


# ----------------------------------------------------------------------------
if __name__ == "__main__":
    key = jax.random.PRNGKey(0)
    k_data, k_tgt, k_param = jax.random.split(key, 3)

    N, C, H, W = 8, 4, 16, 16
    NUM_CLASSES = 16
    D = C * H * W

    data = jax.random.normal(k_data, (N, C, H, W), jnp.float32)
    target = jax.random.randint(k_tgt, (N,), 0, NUM_CLASSES, jnp.int32)

    model = Distiller(D, NUM_CLASSES, k_param)

    # Training-mode forward: fused logits + CE loss in a single Pallas kernel.
    model.train(True)
    logits, losses = model.forward(data=data, target=target)
    logits = jax.block_until_ready(logits)
    ce = jax.block_until_ready(losses["ce"])

    # Eval-mode forward (student only).
    model.train(False)
    logits_eval = jax.block_until_ready(model.forward(data=data))

    # Pure-JAX reference using the same bf16 rounding the kernel applies to x / W.
    x_bf = data.reshape(N, -1).astype(jnp.bfloat16).astype(jnp.float32)
    w_bf = model.w.astype(jnp.bfloat16).astype(jnp.float32)
    ref_logits = jnp.dot(x_bf, w_bf, precision=jax.lax.Precision.HIGHEST) + model.b
    ref_ce = jnp.mean(
        jax.nn.logsumexp(ref_logits, axis=1)
        - jnp.take_along_axis(ref_logits, target[:, None], axis=1)[:, 0])

    assert jnp.allclose(logits, ref_logits, atol=2e-3, rtol=2e-3)
    assert jnp.allclose(logits_eval, ref_logits, atol=2e-3, rtol=2e-3)
    assert jnp.allclose(ce, ref_ce, atol=2e-3, rtol=2e-3)

    print("KERNEL_OK")
</pallas_src>

<mosaic_0001>
module attributes {stable_mosaic.version = 11 : i64} {
  func.func @_linear_ce_kernel(%arg0: i32, %arg1: memref<8x1024xf32, #tpu.memory_space<vmem>>, %arg2: memref<8x1xi32, #tpu.memory_space<vmem>>, %arg3: memref<1024x128xbf16, #tpu.memory_space<vmem>>, %arg4: memref<1x128xf32, #tpu.memory_space<vmem>>, %arg5: memref<8x128xf32, #tpu.memory_space<vmem>>, %arg6: memref<8x1xf32, #tpu.memory_space<vmem>>) attributes {dimension_semantics = [#tpu.dimension_semantics<parallel>], iteration_bounds = array<i64: 1>, scalar_prefetch = 0 : i64, scratch_operands = 0 : i64, tpu.core_type = #tpu.core_type<tc>, window_params = [{transform_indices = @transform_0, window_bounds = array<i64: 8, 1024>}, {transform_indices = @transform_1, window_bounds = array<i64: 8, 1>}, {pipeline_mode = #tpu.pipeline_mode<synchronous>, transform_indices = @transform_2, window_bounds = array<i64: 1024, 128>}, {pipeline_mode = #tpu.pipeline_mode<synchronous>, transform_indices = @transform_3, window_bounds = array<i64: 1, 128>}, {transform_indices = @transform_4, window_bounds = array<i64: 8, 128>}, {transform_indices = @transform_5, window_bounds = array<i64: 8, 1>}]} {
    %c0 = arith.constant 0 : index
    %c0_0 = arith.constant 0 : index
    %0 = vector.load %arg1[%c0, %c0_0] : memref<8x1024xf32, #tpu.memory_space<vmem>>, vector<8x1024xf32>
    %1 = arith.truncf %0 : vector<8x1024xf32> to vector<8x1024xbf16>
    %c0_1 = arith.constant 0 : index
    %c0_2 = arith.constant 0 : index
    %2 = vector.load %arg3[%c0_1, %c0_2] : memref<1024x128xbf16, #tpu.memory_space<vmem>>, vector<1024x128xbf16>
    %cst = arith.constant dense<0.000000e+00> : vector<8x128xf32>
    %3 = tpu.matmul %1, %2, %cst {dimension_numbers = #tpu.dot_dimension_numbers<[1], [0], [0], [1], [0, 0, 1, 1], [], []>} : vector<8x1024xbf16>, vector<1024x128xbf16>, vector<8x128xf32> -> vector<8x128xf32>
    %c0_3 = arith.constant 0 : index
    %c0_4 = arith.constant 0 : index
    %4 = vector.load %arg4[%c0_3, %c0_4] : memref<1x128xf32, #tpu.memory_space<vmem>>, vector<1x128xf32>
    %5 = vector.broadcast %4 : vector<1x128xf32> to vector<8x128xf32>
    %6 = arith.addf %3, %5 : vector<8x128xf32>
    %c0_5 = arith.constant 0 : index
    %c0_6 = arith.constant 0 : index
    %7 = vector.load %arg5[%c0_5, %c0_6] : memref<8x128xf32, #tpu.memory_space<vmem>>, vector<8x128xf32>
    tpu.vector_store %arg5[%c0_5, %c0_6], %6 {strides = array<i32>} : memref<8x128xf32, #tpu.memory_space<vmem>>, vector<8x128xf32>,
    %c0_7 = arith.constant 0 : index
    %c0_8 = arith.constant 0 : index
    %8 = vector.load %arg2[%c0_7, %c0_8] : memref<8x1xi32, #tpu.memory_space<vmem>>, vector<8x1xi32>
    %9 = tpu.iota {dimensions = array<i32: 1>} : vector<8x128xi32>
    %c16_i32 = arith.constant 16 : i32
    %10 = vector.broadcast %c16_i32 : i32 to vector<8x128xi32>
    %11 = arith.cmpi slt, %9, %10 : vector<8x128xi32>
    %cst_9 = arith.constant -1.000000e+30 : f32
    %12 = vector.broadcast %cst_9 : f32 to vector<8x128xf32>
    %13 = arith.select %11, %6, %12 : vector<8x128xi1>, vector<8x128xf32>
    %cst_10 = arith.constant dense<0xFF800000> : vector<8xf32>
    %14 = vector.multi_reduction <maximumf>, %13, %cst_10 [1] : vector<8x128xf32> to vector<8xf32>
    %15 = vector.shape_cast %14 : vector<8xf32> to vector<8x1xf32>
    %16 = vector.broadcast %15 : vector<8x1xf32> to vector<8x128xf32>
    %17 = arith.subf %13, %16 : vector<8x128xf32>
    %18 = math.exp %17 : vector<8x128xf32>
    %cst_11 = arith.constant dense<0.000000e+00> : vector<8xf32>
    %19 = vector.multi_reduction <add>, %18, %cst_11 [1] : vector<8x128xf32> to vector<8xf32>
    %20 = vector.shape_cast %19 : vector<8xf32> to vector<8x1xf32>
    %21 = math.log %20 : vector<8x1xf32>
    %22 = arith.addf %15, %21 : vector<8x1xf32>
    %23 = vector.broadcast %8 : vector<8x1xi32> to vector<8x128xi32>
    %24 = arith.cmpi eq, %9, %23 : vector<8x128xi32>
    %cst_12 = arith.constant 0.000000e+00 : f32
    %25 = vector.broadcast %cst_12 : f32 to vector<8x128xf32>
    %26 = arith.select %24, %6, %25 : vector<8x128xi1>, vector<8x128xf32>
    %cst_13 = arith.constant dense<0.000000e+00> : vector<8xf32>
    %27 = vector.multi_reduction <add>, %26, %cst_13 [1] : vector<8x128xf32> to vector<8xf32>
    %28 = vector.shape_cast %27 : vector<8xf32> to vector<8x1xf32>
    %29 = arith.subf %22, %28 : vector<8x1xf32>
    %c0_14 = arith.constant 0 : index
    %c0_15 = arith.constant 0 : index
    %30 = vector.load %arg6[%c0_14, %c0_15] : memref<8x1xf32, #tpu.memory_space<vmem>>, vector<8x1xf32>
    tpu.vector_store %arg6[%c0_14, %c0_15], %29 {strides = array<i32>} : memref<8x1xf32, #tpu.memory_space<vmem>>, vector<8x1xf32>,
    return
  }
  func.func @transform_0(%arg0: i32) -> (i32, i32) {
    %c0_i32 = arith.constant 0 : i32
    %c0_i32_0 = arith.constant 0 : i32
    return %arg0, %c0_i32 : i32, i32
  }
  func.func @transform_1(%arg0: i32) -> (i32, i32) {
    %c0_i32 = arith.constant 0 : i32
    %c0_i32_0 = arith.constant 0 : i32
    return %arg0, %c0_i32 : i32, i32
  }
  func.func @transform_2(%arg0: i32) -> (i32, i32) {
    %c0_i32 = arith.constant 0 : i32
    %c0_i32_0 = arith.constant 0 : i32
    %c0_i32_1 = arith.constant 0 : i32
    return %c0_i32, %c0_i32_0 : i32, i32
  }
  func.func @transform_3(%arg0: i32) -> (i32, i32) {
    %c0_i32 = arith.constant 0 : i32
    %c0_i32_0 = arith.constant 0 : i32
    %c0_i32_1 = arith.constant 0 : i32
    return %c0_i32, %c0_i32_0 : i32, i32
  }
  func.func @transform_4(%arg0: i32) -> (i32, i32) {
    %c0_i32 = arith.constant 0 : i32
    %c0_i32_0 = arith.constant 0 : i32
    return %arg0, %c0_i32 : i32, i32
  }
  func.func @transform_5(%arg0: i32) -> (i32, i32) {
    %c0_i32 = arith.constant 0 : i32
    %c0_i32_0 = arith.constant 0 : i32
    return %arg0, %c0_i32 : i32, i32
  }
}

</mosaic_0001>

<llo_original>
// kernel: student_forward_with_ce.1
$region0: #{student_forward_with_ce.1}
  #allocation0 [shape = 'u32[]', space=smem, size = 0x4, offset = 0x4, fixed_abs, tag = 'smem constant byte address 0x4 - core index']
  #allocation1 [shape = 'u32[72,128]{1,0:T(1,128)}', space=vmem, size = 0x9000, scoped, tag = 'internal scratch']
  %s0 = inlined_call_operand.vmem [shape: f32[8,1024], index: 0, kind: input, shape index: {}]
  %s1 = inlined_call_operand.vmem [shape: s32[8,1], index: 1, kind: input, shape index: {}]
  %s2 = inlined_call_operand.vmem [shape: bf16[1024,128], index: 2, kind: input, shape index: {}]
  %s3 = inlined_call_operand.vmem [shape: f32[1,128], index: 3, kind: input, shape index: {}]
  %s4 = inlined_call_operand.hbm [shape: f32[8,128], index: 4, kind: output, shape index: {0}]
  %s5 = inlined_call_operand.vmem [shape: f32[8,1], index: 5, kind: output, shape index: {1}]
  %6 = xla_tuple %s4, %s5
  %s7 = sld [smem:[#allocation0]]
  $region34: #{student_forward_with_ce.1} parent=0
    _
  %s9 = ssub.s32 1, %s7
  %s10 = scalar_select 0, %s9, %s7
  $region1: #{student_forward_with_ce.1} parent=0
    #allocation2 [shape = 'u8[4096]{0}', space=vmem, size = 0x1000, scoped, tag = 'output window, operand 0, single buffered']
    #allocation3 [shape = 's32[1]{0}', space=sflag, size = 0x4, scoped, tag = 'scoped memory for student_forward_with_ce.1']
    %11 = vsyncpa [#allocation3], 0
    // Predicated region
    $region2: #{student_forward_with_ce.1} parent=1 // pred_check
      _
    $region3: #{student_forward_with_ce.1} parent=1 // pred_check_branch
      %13 = sbr.rel (0) target = $region5
    $region4: #{student_forward_with_ce.1} parent=1 // pred_region
      _
    $region5: #{student_forward_with_ce.1} parent=1 // pred_fallthru
      _
    // Predicated region
    $region6: #{student_forward_with_ce.1} parent=1 // pred_check
      _
    $region7: #{student_forward_with_ce.1} parent=1 // pred_check_branch
      %15 = sbr.rel (0) target = $region9
    $region8: #{student_forward_with_ce.1} parent=1 // pred_region
      _
    $region9: #{student_forward_with_ce.1} parent=1 // pred_fallthru
      _
    // Predicated region
    $region10: #{student_forward_with_ce.1} parent=1 // pred_check
      _
    $region11: #{student_forward_with_ce.1} parent=1 // pred_check_branch
      %17 = sbr.rel (0) target = $region13
    $region12: #{student_forward_with_ce.1} parent=1 // pred_region
      _
    $region13: #{student_forward_with_ce.1} parent=1 // pred_fallthru
      _
    // Predicated region
    $region14: #{student_forward_with_ce.1} parent=1 // pred_check
      _
    $region15: #{student_forward_with_ce.1} parent=1 // pred_check_branch
      %19 = sbr.rel (0) target = $region17
    $region16: #{student_forward_with_ce.1} parent=1 // pred_region
      _
    $region17: #{student_forward_with_ce.1} parent=1 // pred_fallthru
      _
    %v20 = vld [vmem:[%s0] sm:$0xff]
    %v21 = vld [vmem:[%s0 + $0x8] sm:$0xff]
    %v22 = vld [vmem:[%s0 + $0x10] sm:$0xff]
    %v23 = vld [vmem:[%s0 + $0x18] sm:$0xff]
    %v24 = vld [vmem:[%s0 + $0x20] sm:$0xff]
    %v25 = vld [vmem:[%s0 + $0x28] sm:$0xff]
    %v26 = vld [vmem:[%s0 + $0x30] sm:$0xff]
    %v27 = vld [vmem:[%s0 + $0x38] sm:$0xff]
    %v28 = vpack.c.bf16 %v20, %v20
    %v29 = vpack.c.bf16 %v21, %v21
    %v30 = vpack.c.bf16 %v22, %v22
    %v31 = vpack.c.bf16 %v23, %v23
    %v32 = vpack.c.bf16 %v24, %v24
    %v33 = vpack.c.bf16 %v25, %v25
    %v34 = vpack.c.bf16 %v26, %v26
    %v35 = vpack.c.bf16 %v27, %v27
    %v36 = vld [vmem:[%s2] sm:$0xf]
    %v37 = vld [vmem:[%s2 + $0x4] sm:$0xf]
    %v38 = vld [vmem:[%s2 + $0x8] sm:$0xf]
    %v39 = vld [vmem:[%s2 + $0xc] sm:$0xf]
    %v40 = vld [vmem:[%s2 + $0x10] sm:$0xf]
    %v41 = vld [vmem:[%s2 + $0x14] sm:$0xf]
    %v42 = vld [vmem:[%s2 + $0x18] sm:$0xf]
    %v43 = vld [vmem:[%s2 + $0x1c] sm:$0xf]
    %v44 = vld [vmem:[%s2 + $0x20] sm:$0xf]
    %v45 = vld [vmem:[%s2 + $0x24] sm:$0xf]
    %v46 = vld [vmem:[%s2 + $0x28] sm:$0xf]
    %v47 = vld [vmem:[%s2 + $0x2c] sm:$0xf]
    %v48 = vld [vmem:[%s2 + $0x30] sm:$0xf]
    %v49 = vld [vmem:[%s2 + $0x34] sm:$0xf]
    %v50 = vld [vmem:[%s2 + $0x38] sm:$0xf]
    %v51 = vld [vmem:[%s2 + $0x3c] sm:$0xf]
    %v52 = vld [vmem:[%s2 + $0x40] sm:$0xf]
    %v53 = vld [vmem:[%s2 + $0x44] sm:$0xf]
    %v54 = vld [vmem:[%s2 + $0x48] sm:$0xf]
    %v55 = vld [vmem:[%s2 + $0x4c] sm:$0xf]
    %v56 = vld [vmem:[%s2 + $0x50] sm:$0xf]
    %v57 = vld [vmem:[%s2 + $0x54] sm:$0xf]
    %v58 = vld [vmem:[%s2 + $0x58] sm:$0xf]
    %v59 = vld [vmem:[%s2 + $0x5c] sm:$0xf]
    %v60 = vld [vmem:[%s2 + $0x60] sm:$0xf]
    %v61 = vld [vmem:[%s2 + $0x64] sm:$0xf]
    %v62 = vld [vmem:[%s2 + $0x68] sm:$0xf]
    %v63 = vld [vmem:[%s2 + $0x6c] sm:$0xf]
    %v64 = vld [vmem:[%s2 + $0x70] sm:$0xf]
    %v65 = vld [vmem:[%s2 + $0x74] sm:$0xf]
    %v66 = vld [vmem:[%s2 + $0x78] sm:$0xf]
    %v67 = vld [vmem:[%s2 + $0x7c] sm:$0xf]
    %v68 = vld [vmem:[%s2 + $0x80] sm:$0xf]
    %v69 = vld [vmem:[%s2 + $0x84] sm:$0xf]
    %v70 = vld [vmem:[%s2 + $0x88] sm:$0xf]
    %v71 = vld [vmem:[%s2 + $0x8c] sm:$0xf]
    %v72 = vld [vmem:[%s2 + $0x90] sm:$0xf]
    %v73 = vld [vmem:[%s2 + $0x94] sm:$0xf]
    %v74 = vld [vmem:[%s2 + $0x98] sm:$0xf]
    %v75 = vld [vmem:[%s2 + $0x9c] sm:$0xf]
    %v76 = vld [vmem:[%s2 + $0xa0] sm:$0xf]
    %v77 = vld [vmem:[%s2 + $0xa4] sm:$0xf]
    %v78 = vld [vmem:[%s2 + $0xa8] sm:$0xf]
    %v79 = vld [vmem:[%s2 + $0xac] sm:$0xf]
    %v80 = vld [vmem:[%s2 + $0xb0] sm:$0xf]
    %v81 = vld [vmem:[%s2 + $0xb4] sm:$0xf]
    %v82 = vld [vmem:[%s2 + $0xb8] sm:$0xf]
    %v83 = vld [vmem:[%s2 + $0xbc] sm:$0xf]
    %v84 = vld [vmem:[%s2 + $0xc0] sm:$0xf]
    %v85 = vld [vmem:[%s2 + $0xc4] sm:$0xf]
    %v86 = vld [vmem:[%s2 + $0xc8] sm:$0xf]
    %v87 = vld [vmem:[%s2 + $0xcc] sm:$0xf]
    %v88 = vld [vmem:[%s2 + $0xd0] sm:$0xf]
    %v89 = vld [vmem:[%s2 + $0xd4] sm:$0xf]
    %v90 = vld [vmem:[%s2 + $0xd8] sm:$0xf]
    %v91 = vld [vmem:[%s2 + $0xdc] sm:$0xf]
    %v92 = vld [vmem:[%s2 + $0xe0] sm:$0xf]
    %v93 = vld [vmem:[%s2 + $0xe4] sm:$0xf]
    %v94 = vld [vmem:[%s2 + $0xe8] sm:$0xf]
    %v95 = vld [vmem:[%s2 + $0xec] sm:$0xf]
    %v96 = vld [vmem:[%s2 + $0xf0] sm:$0xf]
    %v97 = vld [vmem:[%s2 + $0xf4] sm:$0xf]
    %v98 = vld [vmem:[%s2 + $0xf8] sm:$0xf]
    %v99 = vld [vmem:[%s2 + $0xfc] sm:$0xf]
    %v100 = vld [vmem:[%s2 + $0x100] sm:$0xf]
    %v101 = vld [vmem:[%s2 + $0x104] sm:$0xf]
    %v102 = vld [vmem:[%s2 + $0x108] sm:$0xf]
    %v103 = vld [vmem:[%s2 + $0x10c] sm:$0xf]
    %v104 = vld [vmem:[%s2 + $0x110] sm:$0xf]
    %v105 = vld [vmem:[%s2 + $0x114] sm:$0xf]
    %v106 = vld [vmem:[%s2 + $0x118] sm:$0xf]
    %v107 = vld [vmem:[%s2 + $0x11c] sm:$0xf]
    %v108 = vld [vmem:[%s2 + $0x120] sm:$0xf]
    %v109 = vld [vmem:[%s2 + $0x124] sm:$0xf]
    %v110 = vld [vmem:[%s2 + $0x128] sm:$0xf]
    %v111 = vld [vmem:[%s2 + $0x12c] sm:$0xf]
    %v112 = vld [vmem:[%s2 + $0x130] sm:$0xf]
    %v113 = vld [vmem:[%s2 + $0x134] sm:$0xf]
    %v114 = vld [vmem:[%s2 + $0x138] sm:$0xf]
    %v115 = vld [vmem:[%s2 + $0x13c] sm:$0xf]
    %v116 = vld [vmem:[%s2 + $0x140] sm:$0xf]
    %v117 = vld [vmem:[%s2 + $0x144] sm:$0xf]
    %v118 = vld [vmem:[%s2 + $0x148] sm:$0xf]
    %v119 = vld [vmem:[%s2 + $0x14c] sm:$0xf]
    %v120 = vld [vmem:[%s2 + $0x150] sm:$0xf]
    %v121 = vld [vmem:[%s2 + $0x154] sm:$0xf]
    %v122 = vld [vmem:[%s2 + $0x158] sm:$0xf]
    %v123 = vld [vmem:[%s2 + $0x15c] sm:$0xf]
    %v124 = vld [vmem:[%s2 + $0x160] sm:$0xf]
    %v125 = vld [vmem:[%s2 + $0x164] sm:$0xf]
    %v126 = vld [vmem:[%s2 + $0x168] sm:$0xf]
    %v127 = vld [vmem:[%s2 + $0x16c] sm:$0xf]
    %v128 = vld [vmem:[%s2 + $0x170] sm:$0xf]
    %v129 = vld [vmem:[%s2 + $0x174] sm:$0xf]
    %v130 = vld [vmem:[%s2 + $0x178] sm:$0xf]
    %v131 = vld [vmem:[%s2 + $0x17c] sm:$0xf]
    %v132 = vld [vmem:[%s2 + $0x180] sm:$0xf]
    %v133 = vld [vmem:[%s2 + $0x184] sm:$0xf]
    %v134 = vld [vmem:[%s2 + $0x188] sm:$0xf]
    %v135 = vld [vmem:[%s2 + $0x18c] sm:$0xf]
    %v136 = vld [vmem:[%s2 + $0x190] sm:$0xf]
    %v137 = vld [vmem:[%s2 + $0x194] sm:$0xf]
    %v138 = vld [vmem:[%s2 + $0x198] sm:$0xf]
    %v139 = vld [vmem:[%s2 + $0x19c] sm:$0xf]
    %v140 = vld [vmem:[%s2 + $0x1a0] sm:$0xf]
    %v141 = vld [vmem:[%s2 + $0x1a4] sm:$0xf]
    %v142 = vld [vmem:[%s2 + $0x1a8] sm:$0xf]
    %v143 = vld [vmem:[%s2 + $0x1ac] sm:$0xf]
    %v144 = vld [vmem:[%s2 + $0x1b0] sm:$0xf]
    %v145 = vld [vmem:[%s2 + $0x1b4] sm:$0xf]
    %v146 = vld [vmem:[%s2 + $0x1b8] sm:$0xf]
    %v147 = vld [vmem:[%s2 + $0x1bc] sm:$0xf]
    %v148 = vld [vmem:[%s2 + $0x1c0] sm:$0xf]
    %v149 = vld [vmem:[%s2 + $0x1c4] sm:$0xf]
    %v150 = vld [vmem:[%s2 + $0x1c8] sm:$0xf]
    %v151 = vld [vmem:[%s2 + $0x1cc] sm:$0xf]
    %v152 = vld [vmem:[%s2 + $0x1d0] sm:$0xf]
    %v153 = vld [vmem:[%s2 + $0x1d4] sm:$0xf]
    %v154 = vld [vmem:[%s2 + $0x1d8] sm:$0xf]
    %v155 = vld [vmem:[%s2 + $0x1dc] sm:$0xf]
    %v156 = vld [vmem:[%s2 + $0x1e0] sm:$0xf]
    %v157 = vld [vmem:[%s2 + $0x1e4] sm:$0xf]
    %v158 = vld [vmem:[%s2 + $0x1e8] sm:$0xf]
    %v159 = vld [vmem:[%s2 + $0x1ec] sm:$0xf]
    %v160 = vld [vmem:[%s2 + $0x1f0] sm:$0xf]
    %v161 = vld [vmem:[%s2 + $0x1f4] sm:$0xf]
    %v162 = vld [vmem:[%s2 + $0x1f8] sm:$0xf]
    %v163 = vld [vmem:[%s2 + $0x1fc] sm:$0xf]
    %v164 = vld [vmem:[%s3] sm:$0x1]
    %v166 = vperm.slane %v164, 0
    %v296 = vunpack.c.l.b16 %v36
    %v297 = vunpack.c.l.b16 %v37
    %v298 = vunpack.c.l.b16 %v38
    %v299 = vunpack.c.l.b16 %v39
    %v300 = vunpack.c.l.b16 %v40
    %v301 = vunpack.c.l.b16 %v41
    %v302 = vunpack.c.l.b16 %v42
    %v303 = vunpack.c.l.b16 %v43
    %v304 = vunpack.c.l.b16 %v44
    %v305 = vunpack.c.l.b16 %v45
    %v306 = vunpack.c.l.b16 %v46
    %v307 = vunpack.c.l.b16 %v47
    %v308 = vunpack.c.l.b16 %v48
    %v309 = vunpack.c.l.b16 %v49
    %v310 = vunpack.c.l.b16 %v50
    %v311 = vunpack.c.l.b16 %v51
    %v312 = vunpack.c.l.b16 %v52
    %v313 = vunpack.c.l.b16 %v53
    %v314 = vunpack.c.l.b16 %v54
    %v315 = vunpack.c.l.b16 %v55
    %v316 = vunpack.c.l.b16 %v56
    %v317 = vunpack.c.l.b16 %v57
    %v318 = vunpack.c.l.b16 %v58
    %v319 = vunpack.c.l.b16 %v59
    %v320 = vunpack.c.l.b16 %v60
    %v321 = vunpack.c.l.b16 %v61
    %v322 = vunpack.c.l.b16 %v62
    %v323 = vunpack.c.l.b16 %v63
    %v324 = vunpack.c.l.b16 %v64
    %v325 = vunpack.c.l.b16 %v65
    %v326 = vunpack.c.l.b16 %v66
    %v327 = vunpack.c.l.b16 %v67
    %v328 = vunpack.c.l.b16 %v68
    %v329 = vunpack.c.l.b16 %v69
    %v330 = vunpack.c.l.b16 %v70
    %v331 = vunpack.c.l.b16 %v71
    %v332 = vunpack.c.l.b16 %v72
    %v333 = vunpack.c.l.b16 %v73
    %v334 = vunpack.c.l.b16 %v74
    %v335 = vunpack.c.l.b16 %v75
    %v336 = vunpack.c.l.b16 %v76
    %v337 = vunpack.c.l.b16 %v77
    %v338 = vunpack.c.l.b16 %v78
    %v339 = vunpack.c.l.b16 %v79
    %v340 = vunpack.c.l.b16 %v80
    %v341 = vunpack.c.l.b16 %v81
    %v342 = vunpack.c.l.b16 %v82
    %v343 = vunpack.c.l.b16 %v83
    %v344 = vunpack.c.l.b16 %v84
    %v345 = vunpack.c.l.b16 %v85
    %v346 = vunpack.c.l.b16 %v86
    %v347 = vunpack.c.l.b16 %v87
    %v348 = vunpack.c.l.b16 %v88
    %v349 = vunpack.c.l.b16 %v89
    %v350 = vunpack.c.l.b16 %v90
    %v351 = vunpack.c.l.b16 %v91
    %v352 = vunpack.c.l.b16 %v92
    %v353 = vunpack.c.l.b16 %v93
    %v354 = vunpack.c.l.b16 %v94
    %v355 = vunpack.c.l.b16 %v95
    %v356 = vunpack.c.l.b16 %v96
    %v357 = vunpack.c.l.b16 %v97
    %v358 = vunpack.c.l.b16 %v98
    %v359 = vunpack.c.l.b16 %v99
    %v360 = vunpack.c.l.b16 %v100
    %v361 = vunpack.c.l.b16 %v101
    %v362 = vunpack.c.l.b16 %v102
    %v363 = vunpack.c.l.b16 %v103
    %v364 = vunpack.c.l.b16 %v104
    %v365 = vunpack.c.l.b16 %v105
    %v366 = vunpack.c.l.b16 %v106
    %v367 = vunpack.c.l.b16 %v107
    %v368 = vunpack.c.l.b16 %v108
    %v369 = vunpack.c.l.b16 %v109
    %v370 = vunpack.c.l.b16 %v110
    %v371 = vunpack.c.l.b16 %v111
    %v372 = vunpack.c.l.b16 %v112
    %v373 = vunpack.c.l.b16 %v113
    %v374 = vunpack.c.l.b16 %v114
    %v375 = vunpack.c.l.b16 %v115
    %v376 = vunpack.c.l.b16 %v116
    %v377 = vunpack.c.l.b16 %v117
    %v378 = vunpack.c.l.b16 %v118
    %v379 = vunpack.c.l.b16 %v119
    %v380 = vunpack.c.l.b16 %v120
    %v381 = vunpack.c.l.b16 %v121
    %v382 = vunpack.c.l.b16 %v122
    %v383 = vunpack.c.l.b16 %v123
    %v384 = vunpack.c.l.b16 %v124
    %v385 = vunpack.c.l.b16 %v125
    %v386 = vunpack.c.l.b16 %v126
    %v387 = vunpack.c.l.b16 %v127
    %v388 = vunpack.c.l.b16 %v128
    %v389 = vunpack.c.l.b16 %v129
    %v390 = vunpack.c.l.b16 %v130
    %v391 = vunpack.c.l.b16 %v131
    %v392 = vunpack.c.l.b16 %v132
    %v393 = vunpack.c.l.b16 %v133
    %v394 = vunpack.c.l.b16 %v134
    %v395 = vunpack.c.l.b16 %v135
    %v396 = vunpack.c.l.b16 %v136
    %v397 = vunpack.c.l.b16 %v137
    %v398 = vunpack.c.l.b16 %v138
    %v399 = vunpack.c.l.b16 %v139
    %v400 = vunpack.c.l.b16 %v140
    %v401 = vunpack.c.l.b16 %v141
    %v402 = vunpack.c.l.b16 %v142
    %v403 = vunpack.c.l.b16 %v143
    %v404 = vunpack.c.l.b16 %v144
    %v405 = vunpack.c.l.b16 %v145
    %v406 = vunpack.c.l.b16 %v146
    %v407 = vunpack.c.l.b16 %v147
    %v408 = vunpack.c.l.b16 %v148
    %v409 = vunpack.c.l.b16 %v149
    %v410 = vunpack.c.l.b16 %v150
    %v411 = vunpack.c.l.b16 %v151
    %v412 = vunpack.c.l.b16 %v152
    %v413 = vunpack.c.l.b16 %v153
    %v414 = vunpack.c.l.b16 %v154
    %v415 = vunpack.c.l.b16 %v155
    %v416 = vunpack.c.l.b16 %v156
    %v417 = vunpack.c.l.b16 %v157
    %v418 = vunpack.c.l.b16 %v158
    %v419 = vunpack.c.l.b16 %v159
    %v420 = vunpack.c.l.b16 %v160
    %v421 = vunpack.c.l.b16 %v161
    %v422 = vunpack.c.l.b16 %v162
    %v423 = vunpack.c.l.b16 %v163
    %v424 = vpack.c.b16 %v297, %v296
    %v425 = vpack.c.b16 %v299, %v298
    %v426 = vpack.c.b16 %v301, %v300
    %v427 = vpack.c.b16 %v303, %v302
    %v428 = vpack.c.b16 %v305, %v304
    %v429 = vpack.c.b16 %v307, %v306
    %v430 = vpack.c.b16 %v309, %v308
    %v431 = vpack.c.b16 %v311, %v310
    %v432 = vpack.c.b16 %v313, %v312
    %v433 = vpack.c.b16 %v315, %v314
    %v434 = vpack.c.b16 %v317, %v316
    %v435 = vpack.c.b16 %v319, %v318
    %v436 = vpack.c.b16 %v321, %v320
    %v437 = vpack.c.b16 %v323, %v322
    %v438 = vpack.c.b16 %v325, %v324
    %v439 = vpack.c.b16 %v327, %v326
    %v440 = vpack.c.b16 %v329, %v328
    %v441 = vpack.c.b16 %v331, %v330
    %v442 = vpack.c.b16 %v333, %v332
    %v443 = vpack.c.b16 %v335, %v334
    %v444 = vpack.c.b16 %v337, %v336
    %v445 = vpack.c.b16 %v339, %v338
    %v446 = vpack.c.b16 %v341, %v340
    %v447 = vpack.c.b16 %v343, %v342
    %v448 = vpack.c.b16 %v345, %v344
    %v449 = vpack.c.b16 %v347, %v346
    %v450 = vpack.c.b16 %v349, %v348
    %v451 = vpack.c.b16 %v351, %v350
    %v452 = vpack.c.b16 %v353, %v352
    %v453 = vpack.c.b16 %v355, %v354
    %v454 = vpack.c.b16 %v357, %v356
    %v455 = vpack.c.b16 %v359, %v358
    %v456 = vpack.c.b16 %v361, %v360
    %v457 = vpack.c.b16 %v363, %v362
    %v458 = vpack.c.b16 %v365, %v364
    %v459 = vpack.c.b16 %v367, %v366
    %v460 = vpack.c.b16 %v369, %v368
    %v461 = vpack.c.b16 %v371, %v370
    %v462 = vpack.c.b16 %v373, %v372
    %v463 = vpack.c.b16 %v375, %v374
    %v464 = vpack.c.b16 %v377, %v376
    %v465 = vpack.c.b16 %v379, %v378
    %v466 = vpack.c.b16 %v381, %v380
    %v467 = vpack.c.b16 %v383, %v382
    %v468 = vpack.c.b16 %v385, %v384
    %v469 = vpack.c.b16 %v387, %v386
    %v470 = vpack.c.b16 %v389, %v388
    %v471 = vpack.c.b16 %v391, %v390
    %v472 = vpack.c.b16 %v393, %v392
    %v473 = vpack.c.b16 %v395, %v394
    %v474 = vpack.c.b16 %v397, %v396
    %v475 = vpack.c.b16 %v399, %v398
    %v476 = vpack.c.b16 %v401, %v400
    %v477 = vpack.c.b16 %v403, %v402
    %v478 = vpack.c.b16 %v405, %v404
    %v479 = vpack.c.b16 %v407, %v406
    %v480 = vpack.c.b16 %v409, %v408
    %v481 = vpack.c.b16 %v411, %v410
    %v482 = vpack.c.b16 %v413, %v412
    %v483 = vpack.c.b16 %v415, %v414
    %v484 = vpack.c.b16 %v417, %v416
    %v485 = vpack.c.b16 %v419, %v418
    %v486 = vpack.c.b16 %v421, %v420
    %v487 = vpack.c.b16 %v423, %v422
    %552 = vmatpush.bf16.msra.mxu0 %v431
    %553 = vmatpush.bf16.msra.mxu0 %v430
    %554 = vmatpush.bf16.msra.mxu0 %v429
    %555 = vmatpush.bf16.msra.mxu0 %v428
    %556 = vmatpush.bf16.msra.mxu0 %v427
    %557 = vmatpush.bf16.msra.mxu0 %v426
    %558 = vmatpush.bf16.msra.mxu0 %v425
    %559 = vmatpush.bf16.msra.mxu0 %v424
    %560 = vmatmul.bf16.gmra.mxu0 %v28
    %v561 = vpop.f32.mrf.mxu0
    %v562 = vadd.f32 %v166, %v561
    %v563 = vpop.f32.mrf.mxu0
    %564 = vdwg.mxu0
    %565 = vmatpush.bf16.msra.mxu0 %v439
    %566 = vmatpush.bf16.msra.mxu0 %v438
    %567 = vmatpush.bf16.msra.mxu0 %v437
    %568 = vmatpush.bf16.msra.mxu0 %v436
    %569 = vmatpush.bf16.msra.mxu0 %v435
    %570 = vmatpush.bf16.msra.mxu0 %v434
    %571 = vmatpush.bf16.msra.mxu0 %v433
    %572 = vmatpush.bf16.msra.mxu0 %v432
    %573 = vmatmul.bf16.gmra.mxu0 %v29
    %v574 = vpop.f32.mrf.mxu0
    %v575 = vadd.f32 %v562, %v574
    %v576 = vpop.f32.mrf.mxu0
    %577 = vdwg.mxu0
    %578 = vmatpush.bf16.msra.mxu0 %v447
    %579 = vmatpush.bf16.msra.mxu0 %v446
    %580 = vmatpush.bf16.msra.mxu0 %v445
    %581 = vmatpush.bf16.msra.mxu0 %v444
    %582 = vmatpush.bf16.msra.mxu0 %v443
    %583 = vmatpush.bf16.msra.mxu0 %v442
    %584 = vmatpush.bf16.msra.mxu0 %v441
    %585 = vmatpush.bf16.msra.mxu0 %v440
    %586 = vmatmul.bf16.gmra.mxu0 %v30
    %v587 = vpop.f32.mrf.mxu0
    %v588 = vadd.f32 %v575, %v587
    %v589 = vpop.f32.mrf.mxu0
    %590 = vdwg.mxu0
    %591 = vmatpush.bf16.msra.mxu0 %v455
    %592 = vmatpush.bf16.msra.mxu0 %v454
    %593 = vmatpush.bf16.msra.mxu0 %v453
    %594 = vmatpush.bf16.msra.mxu0 %v452
    %595 = vmatpush.bf16.msra.mxu0 %v451
    %596 = vmatpush.bf16.msra.mxu0 %v450
    %597 = vmatpush.bf16.msra.mxu0 %v449
    %598 = vmatpush.bf16.msra.mxu0 %v448
    %599 = vmatmul.bf16.gmra.mxu0 %v31
    %v600 = vpop.f32.mrf.mxu0
    %v601 = vadd.f32 %v588, %v600
    %v602 = vpop.f32.mrf.mxu0
    %603 = vdwg.mxu0
    %604 = vmatpush.bf16.msra.mxu0 %v463
    %605 = vmatpush.bf16.msra.mxu0 %v462
    %606 = vmatpush.bf16.msra.mxu0 %v461
    %607 = vmatpush.bf16.msra.mxu0 %v460
    %608 = vmatpush.bf16.msra.mxu0 %v459
    %609 = vmatpush.bf16.msra.mxu0 %v458
    %610 = vmatpush.bf16.msra.mxu0 %v457
    %611 = vmatpush.bf16.msra.mxu0 %v456
    %612 = vmatmul.bf16.gmra.mxu0 %v32
    %v613 = vpop.f32.mrf.mxu0
    %v614 = vadd.f32 %v601, %v613
    %v615 = vpop.f32.mrf.mxu0
    %616 = vdwg.mxu0
    %617 = vmatpush.bf16.msra.mxu0 %v471
    %618 = vmatpush.bf16.msra.mxu0 %v470
    %619 = vmatpush.bf16.msra.mxu0 %v469
    %620 = vmatpush.bf16.msra.mxu0 %v468
    %621 = vmatpush.bf16.msra.mxu0 %v467
    %622 = vmatpush.bf16.msra.mxu0 %v466
    %623 = vmatpush.bf16.msra.mxu0 %v465
    %624 = vmatpush.bf16.msra.mxu0 %v464
    %625 = vmatmul.bf16.gmra.mxu0 %v33
    %v626 = vpop.f32.mrf.mxu0
    %v627 = vadd.f32 %v614, %v626
    %v628 = vpop.f32.mrf.mxu0
    %629 = vdwg.mxu0
    %630 = vmatpush.bf16.msra.mxu0 %v479
    %631 = vmatpush.bf16.msra.mxu0 %v478
    %632 = vmatpush.bf16.msra.mxu0 %v477
    %633 = vmatpush.bf16.msra.mxu0 %v476
    %634 = vmatpush.bf16.msra.mxu0 %v475
    %635 = vmatpush.bf16.msra.mxu0 %v474
    %636 = vmatpush.bf16.msra.mxu0 %v473
    %637 = vmatpush.bf16.msra.mxu0 %v472
    %638 = vmatmul.bf16.gmra.mxu0 %v34
    %v639 = vpop.f32.mrf.mxu0
    %v640 = vadd.f32 %v627, %v639
    %v641 = vpop.f32.mrf.mxu0
    %642 = vdwg.mxu0
    %643 = vmatpush.bf16.msra.mxu0 %v487
    %644 = vmatpush.bf16.msra.mxu0 %v486
    %645 = vmatpush.bf16.msra.mxu0 %v485
    %646 = vmatpush.bf16.msra.mxu0 %v484
    %647 = vmatpush.bf16.msra.mxu0 %v483
    %648 = vmatpush.bf16.msra.mxu0 %v482
    %649 = vmatpush.bf16.msra.mxu0 %v481
    %650 = vmatpush.bf16.msra.mxu0 %v480
    %651 = vmatmul.bf16.gmra.mxu0 %v35
    %v652 = vpop.f32.mrf.mxu0
    %v653 = vadd.f32 %v640, %v652
    %v654 = vpop.f32.mrf.mxu0
    %655 = vdwg.mxu0
    %656 = vst [vmem:[#allocation2] sm:$0xff] %v653
    %v657 = vld [vmem:[%s1] sm:$0xff]
    %v658 = vlaneseq
    %v659 = vand.u32 %v658, 127
    %vm660 = vcmp.lt.s32.totalorder %v659, 16
    %v661 = vsel %vm660, %v653, -1e+30
    %662 = vmax.xlane.f32.xlu0 %v661
    %v663 = vpop.xlane.xlu0 %662
    %v664 = vsub.f32 %v661, %v663
    %v665 = vmul.f32 %v664, 1.442695
    %v666 = vpow.pop %v665
    %667 = vadd.xlane.f32.xlu0 %v666
    %v668 = vpop.xlane.xlu0 %667
    %v669 = vlog2.pop %v668
    %v670 = vmul.f32 %v669, 0.6931472
    %v671 = vadd.f32 %v663, %v670
    %672 = vset.pattern.permute.xlu0 0
    %673 = vperm.xlu0 %672, %v657
    %v674 = vpop.permute.xlu0 %673
    %vm675 = vcmp.eq.s32.totalorder %v659, %v674
    %v676 = vsel %vm675, %v653, 0.0
    %677 = vadd.xlane.f32.xlu0 %v676
    %v678 = vpop.xlane.xlu0 %677
    %v679 = vsub.f32 %v671, %v678
    %vm680 = vcmask 7168
    %681 = vst.msk [vmem:[%s5] sm:$0xff] %vm680, %v679
    // Predicated region
    $region18: #{student_forward_with_ce.1} parent=1 // pred_check
      _
    $region19: #{student_forward_with_ce.1} parent=1 // pred_check_branch
      %683 = sbr.rel (0) target = $region21
    $region20: #{student_forward_with_ce.1} parent=1 // pred_region
      %685 = vsyncadd [#allocation3], 0
      %s687 = sshll.u32 [#allocation2], 4
      %s688 = int_to_ptr.vmem [resolvable:$true] %s687
      %s689 = sshll.u32 %s4, 4
      %s690 = int_to_ptr.hbm [resolvable:$true] %s689
      %692 = dma.vmem_to_hbm [thread:$0]  %s688, 128, %s690, [#allocation3]
    $region21: #{student_forward_with_ce.1} parent=1 // pred_fallthru
      _
    // Predicated region
    $region22: #{student_forward_with_ce.1} parent=1 // pred_check
      _
    $region23: #{student_forward_with_ce.1} parent=1 // pred_check_branch
      %694 = sbr.rel (0) target = $region25
    $region24: #{student_forward_with_ce.1} parent=1 // pred_region
      _
    $region25: #{student_forward_with_ce.1} parent=1 // pred_fallthru
      _
    // Predicated region
    $region26: #{student_forward_with_ce.1} parent=1 // pred_check
      _
    $region27: #{student_forward_with_ce.1} parent=1 // pred_check_branch
      %696 = sbr.rel (0) target = $region29
    $region28: #{student_forward_with_ce.1} parent=1 // pred_region
      %698 = dma.done [#allocation3], 128
    $region29: #{student_forward_with_ce.1} parent=1 // pred_fallthru
      _
    // Predicated region
    $region30: #{student_forward_with_ce.1} parent=1 // pred_check
      _
    $region31: #{student_forward_with_ce.1} parent=1 // pred_check_branch
      %700 = sbr.rel (0) target = $region33
    $region32: #{student_forward_with_ce.1} parent=1 // pred_region
      _
    $region33: #{student_forward_with_ce.1} parent=1 // pred_fallthru
      _
    %701 = vsyncpa [#allocation3], 1

</llo_original>
